<compile_context>
chip_gen: v5e
topology: v5e:2x2
jax: 0.10.0
libtpu: 0.0.40
codegen_flags: <defaults>
</compile_context>

<pallas_src>
import jax
import jax.numpy as jnp
from jax.experimental import pallas as pl
from jax.experimental.pallas import tpu as pltpu

LANE = 128
OUT_COLS = 8   # minimal sublane-friendly width holding the 2 real output columns


def _round_up(x, m):
    return (x + m - 1) // m * m


def _pad_axis(a, axis, new_size):
    pad = new_size - a.shape[axis]
    if pad == 0:
        return a
    widths = [(0, 0)] * a.ndim
    widths[axis] = (0, pad)
    return jnp.pad(a, widths)


def _make_scene_mlp_kernel(n_scene_layers: int, n_merge_layers: int, tile_b: int):
    """Fused kernel. Ref order:
       x_stacked,
       [scene W_i, scene b_i] * n_scene_layers,
       merge W_0 top-half, merge W_0 bottom-half, merge b_0,
       [merge W_i, merge b_i] * (n_merge_layers - 1),
       out
    """

    def kernel(*refs):
        idx = 0
        x_ref = refs[idx]
        idx += 1
        scene = []
        for _ in range(n_scene_layers):
            scene.append((refs[idx], refs[idx + 1]))
            idx += 2
        wm0_a_ref, wm0_b_ref, bm0_ref = refs[idx], refs[idx + 1], refs[idx + 2]
        idx += 3
        merge = []
        for _ in range(n_merge_layers - 1):
            merge.append((refs[idx], refs[idx + 1]))
            idx += 2
        out_ref = refs[idx]

        # --- scene MLP, applied once to the pre-stacked [x1; x2] block ------
        h = x_ref[...]                                  # [2*tile_b, F] bf16
        compute_dtype = h.dtype
        acc = None
        for i, (w_ref, b_ref) in enumerate(scene):
            if i > 0:                                   # ReLU between scene layers
                h = jnp.maximum(acc, 0.0).astype(compute_dtype)
            acc = (jnp.dot(h, w_ref[...], preferred_element_type=jnp.float32)
                   + b_ref[...])
        s = acc.astype(compute_dtype)                   # final scene layer: no ReLU
        s1, s2 = s[:tile_b], s[tile_b:]                 # (16,128)-aligned split

        # --- first merge layer on the virtual concat([s1, s2], axis=1) -----
        acc = (jnp.dot(s1, wm0_a_ref[...], preferred_element_type=jnp.float32)
               + jnp.dot(s2, wm0_b_ref[...], preferred_element_type=jnp.float32)
               + bm0_ref[...])
        # --- remaining merge layers (ReLU before each, none after the last) -
        for (w_ref, b_ref) in merge:
            h = jnp.maximum(acc, 0.0).astype(compute_dtype)
            acc = (jnp.dot(h, w_ref[...], preferred_element_type=jnp.float32)
                   + b_ref[...])

        # store only the narrow real output (few masked vst << padded slab DMA)
        out_ref[...] = acc[:, :OUT_COLS].astype(out_ref.dtype)

    return kernel


def init_scene_mlp_params(key, n_objects, f_obj, layers_scene, f_scene,
                          layers_merge, dtype=jnp.float32):
    """Deterministic parameter init mirroring the PyTorch __init__ shapes."""
    params = {"scene": [], "merge": []}

    def linear(key, f_in, f_out):
        kw, kb = jax.random.split(key)
        bound = 1.0 / jnp.sqrt(f_in)
        w = jax.random.uniform(kw, (f_in, f_out), dtype, -bound, bound)
        b = jax.random.uniform(kb, (1, f_out), dtype, -bound, bound)
        return w, b

    f_in = f_obj * n_objects
    for f_out in list(layers_scene) + [f_scene]:
        key, sub = jax.random.split(key)
        params["scene"].append(linear(sub, f_in, f_out))
        f_in = f_out

    f_in = 2 * f_scene
    for f_out in list(layers_merge) + [2]:
        key, sub = jax.random.split(key)
        params["merge"].append(linear(sub, f_in, f_out))
        f_in = f_out

    return params


def prepare_scene_mlp_params(params, f_scene, compute_dtype=jnp.bfloat16):
    """One-time prep: zero-pad hidden widths to 128 lanes, split the first merge
    weight for the virtual concat, and cast weights to the compute dtype."""
    prepped = {"scene": [], "merge": []}

    in_dim = params["scene"][0][0].shape[0]             # F = n_objects * f_obj
    for w, b in params["scene"]:
        f_out_p = _round_up(w.shape[1], LANE)
        w_p = _pad_axis(_pad_axis(w, 0, in_dim), 1, f_out_p).astype(compute_dtype)
        b_p = _pad_axis(b, 1, f_out_p).astype(jnp.float32)
        prepped["scene"].append((w_p, b_p))
        in_dim = f_out_p
    f_scene_p = in_dim

    wm0, bm0 = params["merge"][0]
    h0_p = _round_up(wm0.shape[1], LANE)
    prepped["wm0_a"] = _pad_axis(_pad_axis(wm0[:f_scene, :], 0, f_scene_p), 1, h0_p
                                 ).astype(compute_dtype)
    prepped["wm0_b"] = _pad_axis(_pad_axis(wm0[f_scene:, :], 0, f_scene_p), 1, h0_p
                                 ).astype(compute_dtype)
    prepped["bm0"] = _pad_axis(bm0, 1, h0_p).astype(jnp.float32)

    in_dim = h0_p
    for w, b in params["merge"][1:]:
        f_out_p = _round_up(w.shape[1], LANE)
        w_p = _pad_axis(_pad_axis(w, 0, in_dim), 1, f_out_p).astype(compute_dtype)
        b_p = _pad_axis(b, 1, f_out_p).astype(jnp.float32)
        prepped["merge"].append((w_p, b_p))
        in_dim = f_out_p

    return prepped


def scene_mlp_forward(x1, x2, prepped, *, compute_dtype=jnp.bfloat16, tile_b=None):
    """Fused SceneMLP forward. x1, x2: [B, n_objects * f_obj]. Returns [B, 2] f32."""
    B, F = x1.shape
    n_scene = len(prepped["scene"])
    n_merge = len(prepped["merge"]) + 1

    # ---- batch tiling: big tiles amortize the ~0.35us/step overhead, but keep
    # >=2 grid steps so both v7x TensorCores get work; multiple of 16 (bf16).
    if tile_b is None:
        tile_b = min(2048, _round_up(max(1, -(-B // 2)), 16))
    tile_b = max(16, _round_up(tile_b, 16))
    B_pad = _round_up(B, tile_b)
    grid_steps = B_pad // tile_b

    # ---- pre-interleave x1/x2 per tile -> single lane-dense input stream ----
    x1_p = _pad_axis(x1, 0, B_pad).astype(compute_dtype).reshape(grid_steps, tile_b, F)
    x2_p = _pad_axis(x2, 0, B_pad).astype(compute_dtype).reshape(grid_steps, tile_b, F)
    x_stacked = jnp.concatenate([x1_p, x2_p], axis=1).reshape(2 * B_pad, F)

    # ---- specs --------------------------------------------------------------
    const = lambda i: (0, 0)
    inputs = [x_stacked]
    in_specs = [pl.BlockSpec((2 * tile_b, F), lambda i: (i, 0))]
    for w, b in prepped["scene"]:
        inputs += [w, b]
        in_specs += [pl.BlockSpec(w.shape, const), pl.BlockSpec(b.shape, const)]
    inputs += [prepped["wm0_a"], prepped["wm0_b"], prepped["bm0"]]
    in_specs += [pl.BlockSpec(prepped["wm0_a"].shape, const),
                 pl.BlockSpec(prepped["wm0_b"].shape, const),
                 pl.BlockSpec(prepped["bm0"].shape, const)]
    for w, b in prepped["merge"]:
        inputs += [w, b]
        in_specs += [pl.BlockSpec(w.shape, const), pl.BlockSpec(b.shape, const)]

    out_spec = pl.BlockSpec((tile_b, OUT_COLS), lambda i: (i, 0))
    out_shape = jax.ShapeDtypeStruct((B_pad, OUT_COLS), jnp.float32)

    # ---- advisory cost estimate (post-padding) -------------------------------
    flops = 0
    for w, _ in prepped["scene"]:
        flops += 2 * (2 * B_pad) * w.shape[0] * w.shape[1]
    flops += 2 * 2 * B_pad * prepped["wm0_a"].shape[0] * prepped["wm0_a"].shape[1]
    for w, _ in prepped["merge"]:
        flops += 2 * B_pad * w.shape[0] * w.shape[1]
    param_bytes = sum(int(a.size) * a.dtype.itemsize for a in inputs[1:])
    bytes_accessed = (int(x_stacked.size) * x_stacked.dtype.itemsize
                      + param_bytes + B_pad * OUT_COLS * 4)
    cost = pl.CostEstimate(flops=int(flops), transcendentals=0,
                           bytes_accessed=int(bytes_accessed))

    kernel = _make_scene_mlp_kernel(n_scene, n_merge, tile_b)

    out_padded = pl.pallas_call(
        kernel,
        grid=(grid_steps,),
        out_shape=out_shape,
        in_specs=in_specs,
        out_specs=out_spec,
        compiler_params=pltpu.CompilerParams(
            dimension_semantics=("parallel",),
            vmem_limit_bytes=32 * 1024 * 1024,   # safe on v7x's smaller VMEM
        ),
        cost_estimate=cost,
    )(*inputs)

    return out_padded[:B, :2]


def _reference_forward(x1, x2, params, compute_dtype=jnp.bfloat16):
    """Pure-JAX reference mirroring the kernel's bf16-compute / f32-accumulate path."""
    def mlp(x, layers):
        h = x.astype(compute_dtype)
        acc = None
        for i, (w, b) in enumerate(layers):
            if i > 0:
                h = jnp.maximum(acc, 0.0).astype(compute_dtype)
            acc = (jnp.dot(h, w.astype(compute_dtype),
                           preferred_element_type=jnp.float32)
                   + b.astype(jnp.float32))
        return acc

    s1 = mlp(x1, params["scene"])
    s2 = mlp(x2, params["scene"])
    s = jnp.concatenate([s1, s2], axis=1)
    return mlp(s, params["merge"])


if __name__ == "__main__":
    # Small config consistent with the module.
    n_objects = 4
    f_obj = 8
    layers_scene = (32,)
    f_scene = 16
    layers_merge = (32,)
    batch = 24          # default tiling gives tile_b=16 -> a 2-step batch grid

    key = jax.random.PRNGKey(0)
    kx1, kx2, kparams = jax.random.split(key, 3)

    x1 = jax.random.normal(kx1, (batch, n_objects * f_obj), jnp.float32)
    x2 = jax.random.normal(kx2, (batch, n_objects * f_obj), jnp.float32)

    params = init_scene_mlp_params(
        kparams, n_objects, f_obj, layers_scene, f_scene, layers_merge)
    prepped = prepare_scene_mlp_params(params, f_scene)   # one-time prep

    out = scene_mlp_forward(x1, x2, prepped)
    out = jax.block_until_ready(out)

    ref = _reference_forward(x1, x2, params)
    assert out.shape == (batch, 2), out.shape
    assert jnp.allclose(out, ref, atol=2e-3, rtol=2e-3), (out, ref)

    print("KERNEL_OK")
</pallas_src>

<mosaic_0001>
module attributes {stable_mosaic.version = 11 : i64} {
  func.func @kernel(%arg0: i32, %arg1: memref<32x32xbf16, #tpu.memory_space<vmem>>, %arg2: memref<32x128xbf16, #tpu.memory_space<vmem>>, %arg3: memref<1x128xf32, #tpu.memory_space<vmem>>, %arg4: memref<128x128xbf16, #tpu.memory_space<vmem>>, %arg5: memref<1x128xf32, #tpu.memory_space<vmem>>, %arg6: memref<128x128xbf16, #tpu.memory_space<vmem>>, %arg7: memref<128x128xbf16, #tpu.memory_space<vmem>>, %arg8: memref<1x128xf32, #tpu.memory_space<vmem>>, %arg9: memref<128x128xbf16, #tpu.memory_space<vmem>>, %arg10: memref<1x128xf32, #tpu.memory_space<vmem>>, %arg11: memref<16x8xf32, #tpu.memory_space<vmem>>) attributes {dimension_semantics = [#tpu.dimension_semantics<parallel>], iteration_bounds = array<i64: 2>, scalar_prefetch = 0 : i64, scratch_operands = 0 : i64, tpu.core_type = #tpu.core_type<tc>, window_params = [{transform_indices = @transform_0, window_bounds = array<i64: 32, 32>}, {pipeline_mode = #tpu.pipeline_mode<synchronous>, transform_indices = @transform_1, window_bounds = array<i64: 32, 128>}, {pipeline_mode = #tpu.pipeline_mode<synchronous>, transform_indices = @transform_2, window_bounds = array<i64: 1, 128>}, {pipeline_mode = #tpu.pipeline_mode<synchronous>, transform_indices = @transform_3, window_bounds = array<i64: 128, 128>}, {pipeline_mode = #tpu.pipeline_mode<synchronous>, transform_indices = @transform_4, window_bounds = array<i64: 1, 128>}, {pipeline_mode = #tpu.pipeline_mode<synchronous>, transform_indices = @transform_5, window_bounds = array<i64: 128, 128>}, {pipeline_mode = #tpu.pipeline_mode<synchronous>, transform_indices = @transform_6, window_bounds = array<i64: 128, 128>}, {pipeline_mode = #tpu.pipeline_mode<synchronous>, transform_indices = @transform_7, window_bounds = array<i64: 1, 128>}, {pipeline_mode = #tpu.pipeline_mode<synchronous>, transform_indices = @transform_8, window_bounds = array<i64: 128, 128>}, {pipeline_mode = #tpu.pipeline_mode<synchronous>, transform_indices = @transform_9, window_bounds = array<i64: 1, 128>}, {transform_indices = @transform_10, window_bounds = array<i64: 16, 8>}]} {
    %c0 = arith.constant 0 : index
    %c0_0 = arith.constant 0 : index
    %0 = vector.load %arg1[%c0, %c0_0] : memref<32x32xbf16, #tpu.memory_space<vmem>>, vector<32x32xbf16>
    %c0_1 = arith.constant 0 : index
    %c0_2 = arith.constant 0 : index
    %1 = vector.load %arg2[%c0_1, %c0_2] : memref<32x128xbf16, #tpu.memory_space<vmem>>, vector<32x128xbf16>
    %cst = arith.constant dense<0.000000e+00> : vector<32x128xf32>
    %2 = tpu.matmul %0, %1, %cst {dimension_numbers = #tpu.dot_dimension_numbers<[1], [0], [0], [1], [0, 0, 1, 1], [], []>} : vector<32x32xbf16>, vector<32x128xbf16>, vector<32x128xf32> -> vector<32x128xf32>
    %c0_3 = arith.constant 0 : index
    %c0_4 = arith.constant 0 : index
    %3 = vector.load %arg3[%c0_3, %c0_4] : memref<1x128xf32, #tpu.memory_space<vmem>>, vector<1x128xf32>
    %4 = vector.broadcast %3 : vector<1x128xf32> to vector<32x128xf32>
    %5 = arith.addf %2, %4 : vector<32x128xf32>
    %cst_5 = arith.constant 0.000000e+00 : f32
    %6 = vector.broadcast %cst_5 : f32 to vector<32x128xf32>
    %7 = arith.maximumf %5, %6 : vector<32x128xf32>
    %8 = arith.truncf %7 : vector<32x128xf32> to vector<32x128xbf16>
    %c0_6 = arith.constant 0 : index
    %c0_7 = arith.constant 0 : index
    %9 = vector.load %arg4[%c0_6, %c0_7] : memref<128x128xbf16, #tpu.memory_space<vmem>>, vector<128x128xbf16>
    %cst_8 = arith.constant dense<0.000000e+00> : vector<32x128xf32>
    %10 = tpu.matmul %8, %9, %cst_8 {dimension_numbers = #tpu.dot_dimension_numbers<[1], [0], [0], [1], [0, 0, 1, 1], [], []>} : vector<32x128xbf16>, vector<128x128xbf16>, vector<32x128xf32> -> vector<32x128xf32>
    %c0_9 = arith.constant 0 : index
    %c0_10 = arith.constant 0 : index
    %11 = vector.load %arg5[%c0_9, %c0_10] : memref<1x128xf32, #tpu.memory_space<vmem>>, vector<1x128xf32>
    %12 = vector.broadcast %11 : vector<1x128xf32> to vector<32x128xf32>
    %13 = arith.addf %10, %12 : vector<32x128xf32>
    %14 = arith.truncf %13 : vector<32x128xf32> to vector<32x128xbf16>
    %15 = vector.extract_strided_slice %14 {offsets = [0, 0], sizes = [16, 128], strides = [1, 1]} : vector<32x128xbf16> to vector<16x128xbf16>
    %16 = vector.extract_strided_slice %14 {offsets = [16, 0], sizes = [16, 128], strides = [1, 1]} : vector<32x128xbf16> to vector<16x128xbf16>
    %c0_11 = arith.constant 0 : index
    %c0_12 = arith.constant 0 : index
    %17 = vector.load %arg6[%c0_11, %c0_12] : memref<128x128xbf16, #tpu.memory_space<vmem>>, vector<128x128xbf16>
    %cst_13 = arith.constant dense<0.000000e+00> : vector<16x128xf32>
    %18 = tpu.matmul %15, %17, %cst_13 {dimension_numbers = #tpu.dot_dimension_numbers<[1], [0], [0], [1], [0, 0, 1, 1], [], []>} : vector<16x128xbf16>, vector<128x128xbf16>, vector<16x128xf32> -> vector<16x128xf32>
    %c0_14 = arith.constant 0 : index
    %c0_15 = arith.constant 0 : index
    %19 = vector.load %arg7[%c0_14, %c0_15] : memref<128x128xbf16, #tpu.memory_space<vmem>>, vector<128x128xbf16>
    %cst_16 = arith.constant dense<0.000000e+00> : vector<16x128xf32>
    %20 = tpu.matmul %16, %19, %cst_16 {dimension_numbers = #tpu.dot_dimension_numbers<[1], [0], [0], [1], [0, 0, 1, 1], [], []>} : vector<16x128xbf16>, vector<128x128xbf16>, vector<16x128xf32> -> vector<16x128xf32>
    %21 = arith.addf %18, %20 : vector<16x128xf32>
    %c0_17 = arith.constant 0 : index
    %c0_18 = arith.constant 0 : index
    %22 = vector.load %arg8[%c0_17, %c0_18] : memref<1x128xf32, #tpu.memory_space<vmem>>, vector<1x128xf32>
    %23 = vector.broadcast %22 : vector<1x128xf32> to vector<16x128xf32>
    %24 = arith.addf %21, %23 : vector<16x128xf32>
    %cst_19 = arith.constant 0.000000e+00 : f32
    %25 = vector.broadcast %cst_19 : f32 to vector<16x128xf32>
    %26 = arith.maximumf %24, %25 : vector<16x128xf32>
    %27 = arith.truncf %26 : vector<16x128xf32> to vector<16x128xbf16>
    %c0_20 = arith.constant 0 : index
    %c0_21 = arith.constant 0 : index
    %28 = vector.load %arg9[%c0_20, %c0_21] : memref<128x128xbf16, #tpu.memory_space<vmem>>, vector<128x128xbf16>
    %cst_22 = arith.constant dense<0.000000e+00> : vector<16x128xf32>
    %29 = tpu.matmul %27, %28, %cst_22 {dimension_numbers = #tpu.dot_dimension_numbers<[1], [0], [0], [1], [0, 0, 1, 1], [], []>} : vector<16x128xbf16>, vector<128x128xbf16>, vector<16x128xf32> -> vector<16x128xf32>
    %c0_23 = arith.constant 0 : index
    %c0_24 = arith.constant 0 : index
    %30 = vector.load %arg10[%c0_23, %c0_24] : memref<1x128xf32, #tpu.memory_space<vmem>>, vector<1x128xf32>
    %31 = vector.broadcast %30 : vector<1x128xf32> to vector<16x128xf32>
    %32 = arith.addf %29, %31 : vector<16x128xf32>
    %33 = vector.extract_strided_slice %32 {offsets = [0, 0], sizes = [16, 8], strides = [1, 1]} : vector<16x128xf32> to vector<16x8xf32>
    %c0_25 = arith.constant 0 : index
    %c0_26 = arith.constant 0 : index
    %34 = vector.load %arg11[%c0_25, %c0_26] : memref<16x8xf32, #tpu.memory_space<vmem>>, vector<16x8xf32>
    tpu.vector_store %arg11[%c0_25, %c0_26], %33 {strides = array<i32>} : memref<16x8xf32, #tpu.memory_space<vmem>>, vector<16x8xf32>,
    return
  }
  func.func @transform_0(%arg0: i32) -> (i32, i32) {
    %c0_i32 = arith.constant 0 : i32
    %c0_i32_0 = arith.constant 0 : i32
    return %arg0, %c0_i32 : i32, i32
  }
  func.func @transform_1(%arg0: i32) -> (i32, i32) {
    %c0_i32 = arith.constant 0 : i32
    %c0_i32_0 = arith.constant 0 : i32
    %c0_i32_1 = arith.constant 0 : i32
    return %c0_i32, %c0_i32_0 : i32, i32
  }
  func.func @transform_2(%arg0: i32) -> (i32, i32) {
    %c0_i32 = arith.constant 0 : i32
    %c0_i32_0 = arith.constant 0 : i32
    %c0_i32_1 = arith.constant 0 : i32
    return %c0_i32, %c0_i32_0 : i32, i32
  }
  func.func @transform_3(%arg0: i32) -> (i32, i32) {
    %c0_i32 = arith.constant 0 : i32
    %c0_i32_0 = arith.constant 0 : i32
    %c0_i32_1 = arith.constant 0 : i32
    return %c0_i32, %c0_i32_0 : i32, i32
  }
  func.func @transform_4(%arg0: i32) -> (i32, i32) {
    %c0_i32 = arith.constant 0 : i32
    %c0_i32_0 = arith.constant 0 : i32
    %c0_i32_1 = arith.constant 0 : i32
    return %c0_i32, %c0_i32_0 : i32, i32
  }
  func.func @transform_5(%arg0: i32) -> (i32, i32) {
    %c0_i32 = arith.constant 0 : i32
    %c0_i32_0 = arith.constant 0 : i32
    %c0_i32_1 = arith.constant 0 : i32
    return %c0_i32, %c0_i32_0 : i32, i32
  }
  func.func @transform_6(%arg0: i32) -> (i32, i32) {
    %c0_i32 = arith.constant 0 : i32
    %c0_i32_0 = arith.constant 0 : i32
    %c0_i32_1 = arith.constant 0 : i32
    return %c0_i32, %c0_i32_0 : i32, i32
  }
  func.func @transform_7(%arg0: i32) -> (i32, i32) {
    %c0_i32 = arith.constant 0 : i32
    %c0_i32_0 = arith.constant 0 : i32
    %c0_i32_1 = arith.constant 0 : i32
    return %c0_i32, %c0_i32_0 : i32, i32
  }
  func.func @transform_8(%arg0: i32) -> (i32, i32) {
    %c0_i32 = arith.constant 0 : i32
    %c0_i32_0 = arith.constant 0 : i32
    %c0_i32_1 = arith.constant 0 : i32
    return %c0_i32, %c0_i32_0 : i32, i32
  }
  func.func @transform_9(%arg0: i32) -> (i32, i32) {
    %c0_i32 = arith.constant 0 : i32
    %c0_i32_0 = arith.constant 0 : i32
    %c0_i32_1 = arith.constant 0 : i32
    return %c0_i32, %c0_i32_0 : i32, i32
  }
  func.func @transform_10(%arg0: i32) -> (i32, i32) {
    %c0_i32 = arith.constant 0 : i32
    %c0_i32_0 = arith.constant 0 : i32
    return %arg0, %c0_i32 : i32, i32
  }
}

</mosaic_0001>

<llo_original>
// kernel: tpu_custom_call.1
$region0: #{tpu_custom_call.1}
  #allocation0 [shape = 'u32[]', space=smem, size = 0x4, offset = 0x4, fixed_abs, tag = 'smem constant byte address 0x4 - core index']
  #allocation1 [shape = 'u32[72,128]{1,0:T(1,128)}', space=vmem, size = 0x9000, scoped, tag = 'internal scratch']
  %s0 = inlined_call_operand.vmem [shape: bf16[64,32], index: 0, kind: input, shape index: {}]
  %s1 = inlined_call_operand.vmem [shape: bf16[32,128], index: 1, kind: input, shape index: {}]
  %s2 = inlined_call_operand.vmem [shape: f32[1,128], index: 2, kind: input, shape index: {}]
  %s3 = inlined_call_operand.hbm [shape: bf16[128,128], index: 3, kind: input, shape index: {}]
  %s4 = inlined_call_operand.vmem [shape: f32[1,128], index: 4, kind: input, shape index: {}]
  %s5 = inlined_call_operand.hbm [shape: bf16[128,128], index: 5, kind: input, shape index: {}]
  %s6 = inlined_call_operand.hbm [shape: bf16[128,128], index: 6, kind: input, shape index: {}]
  %s7 = inlined_call_operand.vmem [shape: f32[1,128], index: 7, kind: input, shape index: {}]
  %s8 = inlined_call_operand.hbm [shape: bf16[128,128], index: 8, kind: input, shape index: {}]
  %s9 = inlined_call_operand.vmem [shape: f32[1,128], index: 9, kind: input, shape index: {}]
  %s10 = inlined_call_operand.vmem [shape: f32[32,8], index: 10, kind: output, shape index: {}]
  %s11 = sld [smem:[#allocation0]]
  $region89: #{tpu_custom_call.1} parent=0
    _
  %s13 = ssub.s32 1, %s11
  %s14 = scalar_select 0, %s13, %s11
  $region1: #{tpu_custom_call.1} parent=0
    #allocation2 [shape = 'u8[32768]{0}', space=vmem, size = 0x8000, scoped, tag = 'input window, operand 3, single buffered']
    #allocation3 [shape = 's32[2]{0}', space=sflag, size = 0x8, scoped, tag = 'scoped memory for tpu_custom_call.1']
    #allocation4 [shape = 'u8[32768]{0}', space=vmem, size = 0x8000, scoped, tag = 'input window, operand 5, single buffered']
    #allocation5 [shape = 's32[1]{0}', space=sflag, size = 0x4, scoped, tag = 'scoped memory for tpu_custom_call.1']
    #allocation6 [shape = 'u8[32768]{0}', space=vmem, size = 0x8000, scoped, tag = 'input window, operand 6, single buffered']
    #allocation7 [shape = 'u8[32768]{0}', space=vmem, size = 0x8000, scoped, tag = 'input window, operand 8, single buffered']
    #allocation8 [shape = 's32[1]{0}', space=sflag, size = 0x4, scoped, tag = 'scoped memory for tpu_custom_call.1']
    %15 = vsyncpa [#allocation3], 0
    %16 = vsyncpa [#allocation5], 0
    %17 = vsyncpa [#allocation8], 0
    loop: start=0, step=1, limit=4
    $region2: #{tpu_custom_call.1} parent=1 // loop_pre_header
      _
    $region3: #{tpu_custom_call.1} parent=1 // loop_header
      %s19 = sphi 0, %s23
      %p20 = scmp.ge.s32.totalorder %s19, 4
      %s29 = sphi 0, %s31
      %s32 = sphi 0, %s29
      %s33 = sphi 0, %s32
      %s49 = sphi 0, %s33
      %s53 = sphi 0, %s53
      %s55 = sphi 0, %s53
      %s56 = sphi 0, %s55
      %s70 = sphi 0, %s56
      %s74 = sphi 0, %s74
      %s76 = sphi 0, %s74
      %s77 = sphi 0, %s76
      %s91 = sphi 0, %s77
      %s95 = sphi 0, %s95
      %s97 = sphi 0, %s95
      %s98 = sphi 0, %s97
      %s112 = sphi 0, %s98
      %s116 = sphi 0, %s116
      %s118 = sphi 0, %s116
      %s119 = sphi 0, %s118
      %s133 = sphi 0, %s119
      %s137 = sphi 0, %s137
      %s139 = sphi 0, %s137
      %s140 = sphi 0, %s139
      %s154 = sphi 0, %s140
      %s158 = sphi 0, %s158
      %s160 = sphi 0, %s158
      %s161 = sphi 0, %s160
      %s175 = sphi 0, %s161
      %s179 = sphi 0, %s179
      %s181 = sphi 0, %s179
      %s182 = sphi 0, %s181
      %s196 = sphi 0, %s182
      %s200 = sphi 0, %s200
      %s202 = sphi 0, %s200
      %s203 = sphi 0, %s202
      %s217 = sphi 0, %s203
      %s221 = sphi 0, %s221
      %s223 = sphi 0, %s221
      %s224 = sphi 0, %s223
      %s238 = sphi 0, %s224
      %s244 = sphi 0, %s246
      %s247 = sphi 0, %s244
      %s248 = sphi 0, %s247
      %s264 = sphi 0, %s248
    $region4: #{tpu_custom_call.1} parent=1 // loop_header_branch
      %22 = sbr.rel (%p20) target = $region8
    $region5: #{tpu_custom_call.1} parent=1 // loop_body
      %s24 = ssub.s32 %s19, 1
      %s25 = ssub.s32 %s19, 2
      %s26 = sadd.s32 %s19, 1
      %s27 = ssub.s32 %s19, %s26
      %p28 = scmp.eq.s32.totalorder %s27, 0
      %s30 = sadd.s32 %s29, 1
      %s31 = scalar_select %p28, %s29, %s30
      %p34 = pneg %p28
      %p35 = scmp.eq.s32.totalorder %s19, 1
      %p36 = por %p34, %p35
      %p37 = scmp.ne.s32.totalorder %s29, %s32
      %p38 = scmp.eq.s32.totalorder %s19, 0
      %p39 = por %p37, %p38
      %p40 = scmp.ne.s32.totalorder %s29, %s32
      %p41 = scmp.eq.s32.totalorder %s24, 1
      %p42 = por %p40, %p41
      %p43 = scmp.ne.s32.totalorder %s32, %s33
      %p44 = scmp.eq.s32.totalorder %s24, 0
      %p45 = por %p43, %p44
      %p46 = scmp.ne.s32.totalorder %s32, %s33
      %p47 = scmp.eq.s32.totalorder %s25, 1
      %p48 = por %p46, %p47
      %p50 = scmp.ne.s32.totalorder %s33, %s49
      %p51 = scmp.eq.s32.totalorder %s25, 0
      %p52 = por %p50, %p51
      %s54 = sadd.s32 %s53, 1
      %p57 = scmp.eq.s32.totalorder %s19, 1
      %p58 = scmp.ne.s32.totalorder %s53, %s55
      %p59 = scmp.eq.s32.totalorder %s19, 0
      %p60 = por %p58, %p59
      %p61 = scmp.ne.s32.totalorder %s53, %s55
      %p62 = scmp.eq.s32.totalorder %s24, 1
      %p63 = por %p61, %p62
      %p64 = scmp.ne.s32.totalorder %s55, %s56
      %p65 = scmp.eq.s32.totalorder %s24, 0
      %p66 = por %p64, %p65
      %p67 = scmp.ne.s32.totalorder %s55, %s56
      %p68 = scmp.eq.s32.totalorder %s25, 1
      %p69 = por %p67, %p68
      %p71 = scmp.ne.s32.totalorder %s56, %s70
      %p72 = scmp.eq.s32.totalorder %s25, 0
      %p73 = por %p71, %p72
      %s75 = sadd.s32 %s74, 1
      %p78 = scmp.eq.s32.totalorder %s19, 1
      %p79 = scmp.ne.s32.totalorder %s74, %s76
      %p80 = scmp.eq.s32.totalorder %s19, 0
      %p81 = por %p79, %p80
      %p82 = scmp.ne.s32.totalorder %s74, %s76
      %p83 = scmp.eq.s32.totalorder %s24, 1
      %p84 = por %p82, %p83
      %p85 = scmp.ne.s32.totalorder %s76, %s77
      %p86 = scmp.eq.s32.totalorder %s24, 0
      %p87 = por %p85, %p86
      %p88 = scmp.ne.s32.totalorder %s76, %s77
      %p89 = scmp.eq.s32.totalorder %s25, 1
      %p90 = por %p88, %p89
      %p92 = scmp.ne.s32.totalorder %s77, %s91
      %p93 = scmp.eq.s32.totalorder %s25, 0
      %p94 = por %p92, %p93
      %s96 = sadd.s32 %s95, 1
      %p99 = scmp.eq.s32.totalorder %s19, 1
      %p100 = scmp.ne.s32.totalorder %s95, %s97
      %p101 = scmp.eq.s32.totalorder %s19, 0
      %p102 = por %p100, %p101
      %p103 = scmp.ne.s32.totalorder %s95, %s97
      %p104 = scmp.eq.s32.totalorder %s24, 1
      %p105 = por %p103, %p104
      %p106 = scmp.ne.s32.totalorder %s97, %s98
      %p107 = scmp.eq.s32.totalorder %s24, 0
      %p108 = por %p106, %p107
      %p109 = scmp.ne.s32.totalorder %s97, %s98
      %p110 = scmp.eq.s32.totalorder %s25, 1
      %p111 = por %p109, %p110
      %p113 = scmp.ne.s32.totalorder %s98, %s112
      %p114 = scmp.eq.s32.totalorder %s25, 0
      %p115 = por %p113, %p114
      %s117 = sadd.s32 %s116, 1
      %p120 = scmp.eq.s32.totalorder %s19, 1
      %p121 = scmp.ne.s32.totalorder %s116, %s118
      %p122 = scmp.eq.s32.totalorder %s19, 0
      %p123 = por %p121, %p122
      %p124 = scmp.ne.s32.totalorder %s116, %s118
      %p125 = scmp.eq.s32.totalorder %s24, 1
      %p126 = por %p124, %p125
      %p127 = scmp.ne.s32.totalorder %s118, %s119
      %p128 = scmp.eq.s32.totalorder %s24, 0
      %p129 = por %p127, %p128
      %p130 = scmp.ne.s32.totalorder %s118, %s119
      %p131 = scmp.eq.s32.totalorder %s25, 1
      %p132 = por %p130, %p131
      %p134 = scmp.ne.s32.totalorder %s119, %s133
      %p135 = scmp.eq.s32.totalorder %s25, 0
      %p136 = por %p134, %p135
      %s138 = sadd.s32 %s137, 1
      %p141 = scmp.eq.s32.totalorder %s19, 1
      %p142 = scmp.ne.s32.totalorder %s137, %s139
      %p143 = scmp.eq.s32.totalorder %s19, 0
      %p144 = por %p142, %p143
      %p145 = scmp.ne.s32.totalorder %s137, %s139
      %p146 = scmp.eq.s32.totalorder %s24, 1
      %p147 = por %p145, %p146
      %p148 = scmp.ne.s32.totalorder %s139, %s140
      %p149 = scmp.eq.s32.totalorder %s24, 0
      %p150 = por %p148, %p149
      %p151 = scmp.ne.s32.totalorder %s139, %s140
      %p152 = scmp.eq.s32.totalorder %s25, 1
      %p153 = por %p151, %p152
      %p155 = scmp.ne.s32.totalorder %s140, %s154
      %p156 = scmp.eq.s32.totalorder %s25, 0
      %p157 = por %p155, %p156
      %s159 = sadd.s32 %s158, 1
      %p162 = scmp.eq.s32.totalorder %s19, 1
      %p163 = scmp.ne.s32.totalorder %s158, %s160
      %p164 = scmp.eq.s32.totalorder %s19, 0
      %p165 = por %p163, %p164
      %p166 = scmp.ne.s32.totalorder %s158, %s160
      %p167 = scmp.eq.s32.totalorder %s24, 1
      %p168 = por %p166, %p167
      %p169 = scmp.ne.s32.totalorder %s160, %s161
      %p170 = scmp.eq.s32.totalorder %s24, 0
      %p171 = por %p169, %p170
      %p172 = scmp.ne.s32.totalorder %s160, %s161
      %p173 = scmp.eq.s32.totalorder %s25, 1
      %p174 = por %p172, %p173
      %p176 = scmp.ne.s32.totalorder %s161, %s175
      %p177 = scmp.eq.s32.totalorder %s25, 0
      %p178 = por %p176, %p177
      %s180 = sadd.s32 %s179, 1
      %p183 = scmp.eq.s32.totalorder %s19, 1
      %p184 = scmp.ne.s32.totalorder %s179, %s181
      %p185 = scmp.eq.s32.totalorder %s19, 0
      %p186 = por %p184, %p185
      %p187 = scmp.ne.s32.totalorder %s179, %s181
      %p188 = scmp.eq.s32.totalorder %s24, 1
      %p189 = por %p187, %p188
      %p190 = scmp.ne.s32.totalorder %s181, %s182
      %p191 = scmp.eq.s32.totalorder %s24, 0
      %p192 = por %p190, %p191
      %p193 = scmp.ne.s32.totalorder %s181, %s182
      %p194 = scmp.eq.s32.totalorder %s25, 1
      %p195 = por %p193, %p194
      %p197 = scmp.ne.s32.totalorder %s182, %s196
      %p198 = scmp.eq.s32.totalorder %s25, 0
      %p199 = por %p197, %p198
      %s201 = sadd.s32 %s200, 1
      %p204 = scmp.eq.s32.totalorder %s19, 1
      %p205 = scmp.ne.s32.totalorder %s200, %s202
      %p206 = scmp.eq.s32.totalorder %s19, 0
      %p207 = por %p205, %p206
      %p208 = scmp.ne.s32.totalorder %s200, %s202
      %p209 = scmp.eq.s32.totalorder %s24, 1
      %p210 = por %p208, %p209
      %p211 = scmp.ne.s32.totalorder %s202, %s203
      %p212 = scmp.eq.s32.totalorder %s24, 0
      %p213 = por %p211, %p212
      %p214 = scmp.ne.s32.totalorder %s202, %s203
      %p215 = scmp.eq.s32.totalorder %s25, 1
      %p216 = por %p214, %p215
      %p218 = scmp.ne.s32.totalorder %s203, %s217
      %p219 = scmp.eq.s32.totalorder %s25, 0
      %p220 = por %p218, %p219
      %s222 = sadd.s32 %s221, 1
      %p225 = scmp.eq.s32.totalorder %s19, 1
      %p226 = scmp.ne.s32.totalorder %s221, %s223
      %p227 = scmp.eq.s32.totalorder %s19, 0
      %p228 = por %p226, %p227
      %p229 = scmp.ne.s32.totalorder %s221, %s223
      %p230 = scmp.eq.s32.totalorder %s24, 1
      %p231 = por %p229, %p230
      %p232 = scmp.ne.s32.totalorder %s223, %s224
      %p233 = scmp.eq.s32.totalorder %s24, 0
      %p234 = por %p232, %p233
      %p235 = scmp.ne.s32.totalorder %s223, %s224
      %p236 = scmp.eq.s32.totalorder %s25, 1
      %p237 = por %p235, %p236
      %p239 = scmp.ne.s32.totalorder %s224, %s238
      %p240 = scmp.eq.s32.totalorder %s25, 0
      %p241 = por %p239, %p240
      %s242 = ssub.s32 %s19, %s26
      %p243 = scmp.eq.s32.totalorder %s242, 0
      %s245 = sadd.s32 %s244, 1
      %s246 = scalar_select %p243, %s244, %s245
      %p249 = pneg %p243
      %p250 = scmp.eq.s32.totalorder %s19, 1
      %p251 = por %p249, %p250
      %p252 = scmp.ne.s32.totalorder %s244, %s247
      %p253 = scmp.eq.s32.totalorder %s19, 0
      %p254 = por %p252, %p253
      %p255 = scmp.ne.s32.totalorder %s244, %s247
      %p256 = scmp.eq.s32.totalorder %s24, 1
      %p257 = por %p255, %p256
      %p258 = scmp.ne.s32.totalorder %s247, %s248
      %p259 = scmp.eq.s32.totalorder %s24, 0
      %p260 = por %p258, %p259
      %p261 = scmp.ne.s32.totalorder %s247, %s248
      %p262 = scmp.eq.s32.totalorder %s25, 1
      %p263 = por %p261, %p262
      %p265 = scmp.ne.s32.totalorder %s248, %s264
      %p266 = scmp.eq.s32.totalorder %s25, 0
      %p267 = por %p265, %p266
      %p268 = scmp.le.s32.totalorder 1, %s19
      %p269 = scmp.lt.s32.totalorder %s19, 3
      %p270 = pnand %p268, %p269
      %p271 = pneg %p270
      // Predicated region
      $region9: #{tpu_custom_call.1} parent=5 // pred_check
        _
      $region10: #{tpu_custom_call.1} parent=5 // pred_check_branch
        %273 = sbr.rel (%p270) target = $region12
      $region11: #{tpu_custom_call.1} parent=5 // pred_region
        %s274 = ssub.s32 %s19, 1
        // Predicated region
        $region13: #{tpu_custom_call.1} parent=11 // pred_check
          %p275 = pneg %p66
        $region14: #{tpu_custom_call.1} parent=11 // pred_check_branch
          %277 = sbr.rel (%p275) target = $region16
        $region15: #{tpu_custom_call.1} parent=11 // pred_region
          _
        $region16: #{tpu_custom_call.1} parent=11 // pred_fallthru
          _
        // Predicated region
        $region17: #{tpu_custom_call.1} parent=11 // pred_check
          %p278 = pneg %p87
        $region18: #{tpu_custom_call.1} parent=11 // pred_check_branch
          %280 = sbr.rel (%p278) target = $region20
        $region19: #{tpu_custom_call.1} parent=11 // pred_region
          _
        $region20: #{tpu_custom_call.1} parent=11 // pred_fallthru
          _
        // Predicated region
        $region21: #{tpu_custom_call.1} parent=11 // pred_check
          %p281 = pneg %p108
        $region22: #{tpu_custom_call.1} parent=11 // pred_check_branch
          %283 = sbr.rel (%p281) target = $region24
        $region23: #{tpu_custom_call.1} parent=11 // pred_region
          %285 = vsyncadd [#allocation3], 0
          %s286 = sshll.u32 %s3, 4
          %s287 = int_to_ptr.hbm [resolvable:$true] %s286
          %s288 = sshll.u32 [#allocation2], 4
          %s289 = int_to_ptr.vmem [resolvable:$true] %s288
          %294 = dma.hbm_to_vmem [thread:$0]  %s287, 1024, %s289, [#allocation3], 64, 64, 4
        $region24: #{tpu_custom_call.1} parent=11 // pred_fallthru
          _
        // Predicated region
        $region25: #{tpu_custom_call.1} parent=11 // pred_check
          %p295 = pneg %p129
        $region26: #{tpu_custom_call.1} parent=11 // pred_check_branch
          %297 = sbr.rel (%p295) target = $region28
        $region27: #{tpu_custom_call.1} parent=11 // pred_region
          _
        $region28: #{tpu_custom_call.1} parent=11 // pred_fallthru
          _
        // Predicated region
        $region29: #{tpu_custom_call.1} parent=11 // pred_check
          %p298 = pneg %p150
        $region30: #{tpu_custom_call.1} parent=11 // pred_check_branch
          %300 = sbr.rel (%p298) target = $region32
        $region31: #{tpu_custom_call.1} parent=11 // pred_region
          %302 = vsyncadd [#allocation5], 0
          %s303 = sshll.u32 %s5, 4
          %s304 = int_to_ptr.hbm [resolvable:$true] %s303
          %s305 = sshll.u32 [#allocation4], 4
          %s306 = int_to_ptr.vmem [resolvable:$true] %s305
          %311 = dma.hbm_to_vmem [thread:$0]  %s304, 1024, %s306, [#allocation5], 64, 64, 4
        $region32: #{tpu_custom_call.1} parent=11 // pred_fallthru
          _
        // Predicated region
        $region33: #{tpu_custom_call.1} parent=11 // pred_check
          %p312 = pneg %p171
        $region34: #{tpu_custom_call.1} parent=11 // pred_check_branch
          %314 = sbr.rel (%p312) target = $region36
        $region35: #{tpu_custom_call.1} parent=11 // pred_region
          %316 = vsyncadd [#allocation5], 0
          %s317 = sshll.u32 %s6, 4
          %s318 = int_to_ptr.hbm [resolvable:$true] %s317
          %s319 = sshll.u32 [#allocation6], 4
          %s320 = int_to_ptr.vmem [resolvable:$true] %s319
          %325 = dma.hbm_to_vmem [thread:$0]  %s318, 1024, %s320, [#allocation5], 64, 64, 4
        $region36: #{tpu_custom_call.1} parent=11 // pred_fallthru
          _
        // Predicated region
        $region37: #{tpu_custom_call.1} parent=11 // pred_check
          %p326 = pneg %p192
        $region38: #{tpu_custom_call.1} parent=11 // pred_check_branch
          %328 = sbr.rel (%p326) target = $region40
        $region39: #{tpu_custom_call.1} parent=11 // pred_region
          _
        $region40: #{tpu_custom_call.1} parent=11 // pred_fallthru
          _
        // Predicated region
        $region41: #{tpu_custom_call.1} parent=11 // pred_check
          %p329 = pneg %p213
        $region42: #{tpu_custom_call.1} parent=11 // pred_check_branch
          %331 = sbr.rel (%p329) target = $region44
        $region43: #{tpu_custom_call.1} parent=11 // pred_region
          %333 = vsyncadd [#allocation8], 0
          %s334 = sshll.u32 %s8, 4
          %s335 = int_to_ptr.hbm [resolvable:$true] %s334
          %s336 = sshll.u32 [#allocation7], 4
          %s337 = int_to_ptr.vmem [resolvable:$true] %s336
          %342 = dma.hbm_to_vmem [thread:$0]  %s335, 1024, %s337, [#allocation8], 64, 64, 4
        $region44: #{tpu_custom_call.1} parent=11 // pred_fallthru
          _
        // Predicated region
        $region45: #{tpu_custom_call.1} parent=11 // pred_check
          %p343 = pneg %p234
        $region46: #{tpu_custom_call.1} parent=11 // pred_check_branch
          %345 = sbr.rel (%p343) target = $region48
        $region47: #{tpu_custom_call.1} parent=11 // pred_region
          _
        $region48: #{tpu_custom_call.1} parent=11 // pred_fallthru
          _
      $region12: #{tpu_custom_call.1} parent=5 // pred_fallthru
        _
      %p346 = scmp.lt.s32.totalorder %s19, 2
      // Predicated region
      $region49: #{tpu_custom_call.1} parent=5 // pred_check
        %p347 = pneg %p346
      $region50: #{tpu_custom_call.1} parent=5 // pred_check_branch
        %349 = sbr.rel (%p347) target = $region52
      $region51: #{tpu_custom_call.1} parent=5 // pred_region
        // Predicated region
        $region53: #{tpu_custom_call.1} parent=51 // pred_check
          %p350 = pneg %p39
        $region54: #{tpu_custom_call.1} parent=51 // pred_check_branch
          %352 = sbr.rel (%p350) target = $region56
        $region55: #{tpu_custom_call.1} parent=51 // pred_region
          %s353 = smul.u32 4, %s19
          %p354 = scmp.lt.s32.totalorder %s353, 7
          %s355 = scalar_select %p354, %s353, 7
          %s356 = smul.addr %s355, 4
          %s357 = scalar_lea.vmem %s0, %s356
          %s358 = smul.u32 4, %s19
        $region56: #{tpu_custom_call.1} parent=51 // pred_fallthru
          _
      $region52: #{tpu_custom_call.1} parent=5 // pred_fallthru
        _
      %p359 = scmp.le.s32.totalorder 1, %s19
      %p360 = scmp.lt.s32.totalorder %s19, 3
      %p361 = pnand %p359, %p360
      %p362 = pneg %p361
      // Predicated region
      $region57: #{tpu_custom_call.1} parent=5 // pred_check
        _
      $region58: #{tpu_custom_call.1} parent=5 // pred_check_branch
        %364 = sbr.rel (%p361) target = $region60
      $region59: #{tpu_custom_call.1} parent=5 // pred_region
        %s365 = ssub.s32 %s19, 1
        // Predicated region
        $region61: #{tpu_custom_call.1} parent=59 // pred_check
          %p366 = pneg %p108
        $region62: #{tpu_custom_call.1} parent=59 // pred_check_branch
          %368 = sbr.rel (%p366) target = $region64
        $region63: #{tpu_custom_call.1} parent=59 // pred_region
          %370 = dma.done [#allocation3], 1024
        $region64: #{tpu_custom_call.1} parent=59 // pred_fallthru
          _
        // Predicated region
        $region65: #{tpu_custom_call.1} parent=59 // pred_check
          %p371 = pneg %p150
        $region66: #{tpu_custom_call.1} parent=59 // pred_check_branch
          %373 = sbr.rel (%p371) target = $region68
        $region67: #{tpu_custom_call.1} parent=59 // pred_region
          %375 = dma.done [#allocation5], 1024
        $region68: #{tpu_custom_call.1} parent=59 // pred_fallthru
          _
        // Predicated region
        $region69: #{tpu_custom_call.1} parent=59 // pred_check
          %p376 = pneg %p171
        $region70: #{tpu_custom_call.1} parent=59 // pred_check_branch
          %378 = sbr.rel (%p376) target = $region72
        $region71: #{tpu_custom_call.1} parent=59 // pred_region
          %380 = dma.done [#allocation5], 1024
        $region72: #{tpu_custom_call.1} parent=59 // pred_fallthru
          _
        // Predicated region
        $region73: #{tpu_custom_call.1} parent=59 // pred_check
          %p381 = pneg %p213
        $region74: #{tpu_custom_call.1} parent=59 // pred_check_branch
          %383 = sbr.rel (%p381) target = $region76
        $region75: #{tpu_custom_call.1} parent=59 // pred_region
          %385 = dma.done [#allocation8], 1024
        $region76: #{tpu_custom_call.1} parent=59 // pred_fallthru
          _
        %s386 = smul.u32 4, %s24
        %p387 = scmp.lt.s32.totalorder %s386, 7
        %s388 = scalar_select %p387, %s386, 7
        %s389 = smul.addr %s388, 4
        %s390 = scalar_lea.vmem %s0, %s389
        %p391 = pneg %p45
        %p392 = pneg %p42
        %p393 = pneg %p66
        %p394 = pneg %p63
        %p395 = pneg %p87
        %p396 = pneg %p84
        %p397 = pneg %p108
        %p398 = pneg %p105
        %p399 = pneg %p129
        %p400 = pneg %p126
        %p401 = pneg %p150
        %p402 = pneg %p147
        %p403 = pneg %p171
        %p404 = pneg %p168
        %p405 = pneg %p192
        %p406 = pneg %p189
        %p407 = pneg %p213
        %p408 = pneg %p210
        %p409 = pneg %p234
        %p410 = pneg %p231
        %p411 = pneg %p260
        %p412 = pneg %p257
        %s413 = smul.u32 2, %s24
        %p414 = scmp.lt.s32.totalorder %s413, 3
        %s415 = scalar_select %p414, %s413, 3
        %s416 = smul.addr %s415, 8
        %s417 = scalar_lea.vmem %s10, %s416
        %s418 = smul.u32 4, %s24
        %p419 = scmp.lt.s32.totalorder %s418, 7
        %s420 = scalar_select %p419, %s418, 7
        %s421 = smul.addr %s420, 4
        %s422 = scalar_lea.vmem %s0, %s421
        %s423 = smul.u32 4, %s24
        %s424 = smul.u32 2, %s24
        %p425 = scmp.lt.s32.totalorder %s424, 3
        %s426 = scalar_select %p425, %s424, 3
        %s427 = smul.addr %s426, 8
        %s428 = scalar_lea.vmem %s10, %s427
        %s429 = smul.u32 2, %s24
        %v431 = vld [vmem:[%s422] sm:$0xf]
        %v432 = vld [vmem:[%s422 + $0x4] sm:$0xf]
        %v433 = vld [vmem:[%s422 + $0x8] sm:$0xf]
        %v434 = vld [vmem:[%s422 + $0xc] sm:$0xf]
        %v435 = vld [vmem:[%s1] sm:$0xf]
        %v436 = vld [vmem:[%s1 + $0x4] sm:$0xf]
        %v437 = vld [vmem:[%s1 + $0x8] sm:$0xf]
        %v438 = vld [vmem:[%s1 + $0xc] sm:$0xf]
        %v439 = vld [vmem:[%s2] sm:$0x1]
        %v441 = vperm.slane %v439, 0
        %v447 = vunpack.c.l.b16 %v431
        %v448 = vunpack.c.l.b16 %v432
        %v449 = vunpack.c.l.b16 %v433
        %v450 = vunpack.c.l.b16 %v434
        %v451 = vpack.c.b16 %v448, %v447
        %v452 = vpack.c.b16 %v450, %v449
        %v457 = vunpack.c.l.b16 %v435
        %v458 = vunpack.c.l.b16 %v436
        %v459 = vunpack.c.l.b16 %v437
        %v460 = vunpack.c.l.b16 %v438
        %v461 = vpack.c.b16 %v458, %v457
        %v462 = vpack.c.b16 %v460, %v459
        %vm465 = vcmask 261120
        %v467 = vsel %vm465, %v451, 0
        %v470 = vsel %vm465, %v452, 0
        %472 = vmatpush.bf16.msra.mxu0 0
        %473 = vmatpush.bf16.msra.mxu0 0
        %474 = vmatpush.bf16.msra.mxu0 0
        %475 = vmatpush.bf16.msra.mxu0 0
        %476 = vmatpush.bf16.msra.mxu0 0
        %477 = vmatpush.bf16.msra.mxu0 0
        %478 = vmatpush.bf16.msra.mxu0 %v462
        %479 = vmatpush.bf16.msra.mxu0 %v461
        %480 = vmatmul.bf16.gmra.mxu0 %v467
        %v481 = vpop.f32.mrf.mxu0
        %v482 = vadd.f32 %v441, %v481
        %v483 = vpop.f32.mrf.mxu0
        %v484 = vadd.f32 %v441, %v483
        %485 = vmatmul.bf16.gmra.mxu0 %v470
        %v486 = vpop.f32.mrf.mxu0
        %v487 = vadd.f32 %v441, %v486
        %v488 = vpop.f32.mrf.mxu0
        %v489 = vadd.f32 %v441, %v488
        %490 = vdwg.mxu0
        %v491 = vmax.f32 %v482, 0.0
        %v492 = vmax.f32 %v484, 0.0
        %v493 = vmax.f32 %v487, 0.0
        %v494 = vmax.f32 %v489, 0.0
        %v495 = vpack.c.bf16 %v492, %v491
        %v496 = vpack.c.bf16 %v494, %v493
        %v497 = vld [vmem:[#allocation2] sm:$0xf]
        %v498 = vld [vmem:[#allocation2 + $0x4] sm:$0xf]
        %v499 = vld [vmem:[#allocation2 + $0x8] sm:$0xf]
        %v500 = vld [vmem:[#allocation2 + $0xc] sm:$0xf]
        %v501 = vld [vmem:[#allocation2 + $0x10] sm:$0xf]
        %v502 = vld [vmem:[#allocation2 + $0x14] sm:$0xf]
        %v503 = vld [vmem:[#allocation2 + $0x18] sm:$0xf]
        %v504 = vld [vmem:[#allocation2 + $0x1c] sm:$0xf]
        %v505 = vld [vmem:[#allocation2 + $0x20] sm:$0xf]
        %v506 = vld [vmem:[#allocation2 + $0x24] sm:$0xf]
        %v507 = vld [vmem:[#allocation2 + $0x28] sm:$0xf]
        %v508 = vld [vmem:[#allocation2 + $0x2c] sm:$0xf]
        %v509 = vld [vmem:[#allocation2 + $0x30] sm:$0xf]
        %v510 = vld [vmem:[#allocation2 + $0x34] sm:$0xf]
        %v511 = vld [vmem:[#allocation2 + $0x38] sm:$0xf]
        %v512 = vld [vmem:[#allocation2 + $0x3c] sm:$0xf]
        %v513 = vld [vmem:[%s4] sm:$0x1]
        %v515 = vperm.slane %v513, 0
        %v533 = vunpack.c.l.b16 %v497
        %v534 = vunpack.c.l.b16 %v498
        %v535 = vunpack.c.l.b16 %v499
        %v536 = vunpack.c.l.b16 %v500
        %v537 = vunpack.c.l.b16 %v501
        %v538 = vunpack.c.l.b16 %v502
        %v539 = vunpack.c.l.b16 %v503
        %v540 = vunpack.c.l.b16 %v504
        %v541 = vunpack.c.l.b16 %v505
        %v542 = vunpack.c.l.b16 %v506
        %v543 = vunpack.c.l.b16 %v507
        %v544 = vunpack.c.l.b16 %v508
        %v545 = vunpack.c.l.b16 %v509
        %v546 = vunpack.c.l.b16 %v510
        %v547 = vunpack.c.l.b16 %v511
        %v548 = vunpack.c.l.b16 %v512
        %v549 = vpack.c.b16 %v534, %v533
        %v550 = vpack.c.b16 %v536, %v535
        %v551 = vpack.c.b16 %v538, %v537
        %v552 = vpack.c.b16 %v540, %v539
        %v553 = vpack.c.b16 %v542, %v541
        %v554 = vpack.c.b16 %v544, %v543
        %v555 = vpack.c.b16 %v546, %v545
        %v556 = vpack.c.b16 %v548, %v547
        %565 = vmatpush.bf16.msra.mxu0 %v556
        %566 = vmatpush.bf16.msra.mxu0 %v555
        %567 = vmatpush.bf16.msra.mxu0 %v554
        %568 = vmatpush.bf16.msra.mxu0 %v553
        %569 = vmatpush.bf16.msra.mxu0 %v552
        %570 = vmatpush.bf16.msra.mxu0 %v551
        %571 = vmatpush.bf16.msra.mxu0 %v550
        %572 = vmatpush.bf16.msra.mxu0 %v549
        %573 = vmatmul.bf16.gmra.mxu0 %v495
        %v574 = vpop.f32.mrf.mxu0
        %v575 = vadd.f32 %v515, %v574
        %v576 = vpop.f32.mrf.mxu0
        %v577 = vadd.f32 %v515, %v576
        %578 = vmatmul.bf16.gmra.mxu0 %v496
        %v579 = vpop.f32.mrf.mxu0
        %v580 = vadd.f32 %v515, %v579
        %v581 = vpop.f32.mrf.mxu0
        %v582 = vadd.f32 %v515, %v581
        %583 = vdwg.mxu0
        %v584 = vpack.c.bf16 %v575, %v575
        %v585 = vpack.c.bf16 %v577, %v577
        %v586 = vpack.c.bf16 %v580, %v580
        %v587 = vpack.c.bf16 %v582, %v582
        %v588 = vld [vmem:[#allocation4] sm:$0xf]
        %v589 = vld [vmem:[#allocation4 + $0x4] sm:$0xf]
        %v590 = vld [vmem:[#allocation4 + $0x8] sm:$0xf]
        %v591 = vld [vmem:[#allocation4 + $0xc] sm:$0xf]
        %v592 = vld [vmem:[#allocation4 + $0x10] sm:$0xf]
        %v593 = vld [vmem:[#allocation4 + $0x14] sm:$0xf]
        %v594 = vld [vmem:[#allocation4 + $0x18] sm:$0xf]
        %v595 = vld [vmem:[#allocation4 + $0x1c] sm:$0xf]
        %v596 = vld [vmem:[#allocation4 + $0x20] sm:$0xf]
        %v597 = vld [vmem:[#allocation4 + $0x24] sm:$0xf]
        %v598 = vld [vmem:[#allocation4 + $0x28] sm:$0xf]
        %v599 = vld [vmem:[#allocation4 + $0x2c] sm:$0xf]
        %v600 = vld [vmem:[#allocation4 + $0x30] sm:$0xf]
        %v601 = vld [vmem:[#allocation4 + $0x34] sm:$0xf]
        %v602 = vld [vmem:[#allocation4 + $0x38] sm:$0xf]
        %v603 = vld [vmem:[#allocation4 + $0x3c] sm:$0xf]
        %v604 = vld [vmem:[#allocation6] sm:$0xf]
        %v605 = vld [vmem:[#allocation6 + $0x4] sm:$0xf]
        %v606 = vld [vmem:[#allocation6 + $0x8] sm:$0xf]
        %v607 = vld [vmem:[#allocation6 + $0xc] sm:$0xf]
        %v608 = vld [vmem:[#allocation6 + $0x10] sm:$0xf]
        %v609 = vld [vmem:[#allocation6 + $0x14] sm:$0xf]
        %v610 = vld [vmem:[#allocation6 + $0x18] sm:$0xf]
        %v611 = vld [vmem:[#allocation6 + $0x1c] sm:$0xf]
        %v612 = vld [vmem:[#allocation6 + $0x20] sm:$0xf]
        %v613 = vld [vmem:[#allocation6 + $0x24] sm:$0xf]
        %v614 = vld [vmem:[#allocation6 + $0x28] sm:$0xf]
        %v615 = vld [vmem:[#allocation6 + $0x2c] sm:$0xf]
        %v616 = vld [vmem:[#allocation6 + $0x30] sm:$0xf]
        %v617 = vld [vmem:[#allocation6 + $0x34] sm:$0xf]
        %v618 = vld [vmem:[#allocation6 + $0x38] sm:$0xf]
        %v619 = vld [vmem:[#allocation6 + $0x3c] sm:$0xf]
        %v622 = vunpack.c.l.b16 %v586
        %v623 = vunpack.c.l.b16 %v587
        %v624 = vpack.c.b16 %v623, %v622
        %v642 = vunpack.c.l.b16 %v604
        %v643 = vunpack.c.l.b16 %v605
        %v644 = vunpack.c.l.b16 %v606
        %v645 = vunpack.c.l.b16 %v607
        %v646 = vunpack.c.l.b16 %v608
        %v647 = vunpack.c.l.b16 %v609
        %v648 = vunpack.c.l.b16 %v610
        %v649 = vunpack.c.l.b16 %v611
        %v650 = vunpack.c.l.b16 %v612
        %v651 = vunpack.c.l.b16 %v613
        %v652 = vunpack.c.l.b16 %v614
        %v653 = vunpack.c.l.b16 %v615
        %v654 = vunpack.c.l.b16 %v616
        %v655 = vunpack.c.l.b16 %v617
        %v656 = vunpack.c.l.b16 %v618
        %v657 = vunpack.c.l.b16 %v619
        %v658 = vpack.c.b16 %v643, %v642
        %v659 = vpack.c.b16 %v645, %v644
        %v660 = vpack.c.b16 %v647, %v646
        %v661 = vpack.c.b16 %v649, %v648
        %v662 = vpack.c.b16 %v651, %v650
        %v663 = vpack.c.b16 %v653, %v652
        %v664 = vpack.c.b16 %v655, %v654
        %v665 = vpack.c.b16 %v657, %v656
        %674 = vmatpush.bf16.msra.mxu0 %v665
        %675 = vmatpush.bf16.msra.mxu0 %v664
        %676 = vmatpush.bf16.msra.mxu0 %v663
        %677 = vmatpush.bf16.msra.mxu0 %v662
        %678 = vmatpush.bf16.msra.mxu0 %v661
        %679 = vmatpush.bf16.msra.mxu0 %v660
        %680 = vmatpush.bf16.msra.mxu0 %v659
        %681 = vmatpush.bf16.msra.mxu0 %v658
        %682 = vmatmul.bf16.gmra.mxu0 %v624
        %v683 = vpop.f32.mrf.mxu0
        %v684 = vadd.f32 0.0, %v683
        %v685 = vpop.f32.mrf.mxu0
        %v686 = vadd.f32 0.0, %v685
        %687 = vdwg.mxu0
        %v690 = vunpack.c.l.b16 %v584
        %v691 = vunpack.c.l.b16 %v585
        %v692 = vpack.c.b16 %v691, %v690
        %v710 = vunpack.c.l.b16 %v588
        %v711 = vunpack.c.l.b16 %v589
        %v712 = vunpack.c.l.b16 %v590
        %v713 = vunpack.c.l.b16 %v591
        %v714 = vunpack.c.l.b16 %v592
        %v715 = vunpack.c.l.b16 %v593
        %v716 = vunpack.c.l.b16 %v594
        %v717 = vunpack.c.l.b16 %v595
        %v718 = vunpack.c.l.b16 %v596
        %v719 = vunpack.c.l.b16 %v597
        %v720 = vunpack.c.l.b16 %v598
        %v721 = vunpack.c.l.b16 %v599
        %v722 = vunpack.c.l.b16 %v600
        %v723 = vunpack.c.l.b16 %v601
        %v724 = vunpack.c.l.b16 %v602
        %v725 = vunpack.c.l.b16 %v603
        %v726 = vpack.c.b16 %v711, %v710
        %v727 = vpack.c.b16 %v713, %v712
        %v728 = vpack.c.b16 %v715, %v714
        %v729 = vpack.c.b16 %v717, %v716
        %v730 = vpack.c.b16 %v719, %v718
        %v731 = vpack.c.b16 %v721, %v720
        %v732 = vpack.c.b16 %v723, %v722
        %v733 = vpack.c.b16 %v725, %v724
        %742 = vmatpush.bf16.msra.mxu0 %v733
        %743 = vmatpush.bf16.msra.mxu0 %v732
        %744 = vmatpush.bf16.msra.mxu0 %v731
        %745 = vmatpush.bf16.msra.mxu0 %v730
        %746 = vmatpush.bf16.msra.mxu0 %v729
        %747 = vmatpush.bf16.msra.mxu0 %v728
        %748 = vmatpush.bf16.msra.mxu0 %v727
        %749 = vmatpush.bf16.msra.mxu0 %v726
        %750 = vmatmul.bf16.gmra.mxu0 %v692
        %v751 = vpop.f32.mrf.mxu0
        %v752 = vadd.f32 %v684, %v751
        %v753 = vpop.f32.mrf.mxu0
        %v754 = vadd.f32 %v686, %v753
        %755 = vdwg.mxu0
        %v756 = vld [vmem:[%s7] sm:$0x1]
        %v758 = vperm.slane %v756, 0
        %v760 = vadd.f32 %v752, %v758
        %v761 = vadd.f32 %v754, %v758
        %v762 = vmax.f32 %v760, 0.0
        %v763 = vmax.f32 %v761, 0.0
        %v764 = vpack.c.bf16 %v763, %v762
        %v765 = vld [vmem:[#allocation7] sm:$0xf]
        %v766 = vld [vmem:[#allocation7 + $0x4] sm:$0xf]
        %v767 = vld [vmem:[#allocation7 + $0x8] sm:$0xf]
        %v768 = vld [vmem:[#allocation7 + $0xc] sm:$0xf]
        %v769 = vld [vmem:[#allocation7 + $0x10] sm:$0xf]
        %v770 = vld [vmem:[#allocation7 + $0x14] sm:$0xf]
        %v771 = vld [vmem:[#allocation7 + $0x18] sm:$0xf]
        %v772 = vld [vmem:[#allocation7 + $0x1c] sm:$0xf]
        %v773 = vld [vmem:[#allocation7 + $0x20] sm:$0xf]
        %v774 = vld [vmem:[#allocation7 + $0x24] sm:$0xf]
        %v775 = vld [vmem:[#allocation7 + $0x28] sm:$0xf]
        %v776 = vld [vmem:[#allocation7 + $0x2c] sm:$0xf]
        %v777 = vld [vmem:[#allocation7 + $0x30] sm:$0xf]
        %v778 = vld [vmem:[#allocation7 + $0x34] sm:$0xf]
        %v779 = vld [vmem:[#allocation7 + $0x38] sm:$0xf]
        %v780 = vld [vmem:[#allocation7 + $0x3c] sm:$0xf]
        %v781 = vld [vmem:[%s9] sm:$0x1]
        %v783 = vperm.slane %v781, 0
        %v801 = vunpack.c.l.b16 %v765
        %v802 = vunpack.c.l.b16 %v766
        %v803 = vunpack.c.l.b16 %v767
        %v804 = vunpack.c.l.b16 %v768
        %v805 = vunpack.c.l.b16 %v769
        %v806 = vunpack.c.l.b16 %v770
        %v807 = vunpack.c.l.b16 %v771
        %v808 = vunpack.c.l.b16 %v772
        %v809 = vunpack.c.l.b16 %v773
        %v810 = vunpack.c.l.b16 %v774
        %v811 = vunpack.c.l.b16 %v775
        %v812 = vunpack.c.l.b16 %v776
        %v813 = vunpack.c.l.b16 %v777
        %v814 = vunpack.c.l.b16 %v778
        %v815 = vunpack.c.l.b16 %v779
        %v816 = vunpack.c.l.b16 %v780
        %v817 = vpack.c.b16 %v802, %v801
        %v818 = vpack.c.b16 %v804, %v803
        %v819 = vpack.c.b16 %v806, %v805
        %v820 = vpack.c.b16 %v808, %v807
        %v821 = vpack.c.b16 %v810, %v809
        %v822 = vpack.c.b16 %v812, %v811
        %v823 = vpack.c.b16 %v814, %v813
        %v824 = vpack.c.b16 %v816, %v815
        %833 = vmatpush.bf16.msra.mxu0 %v824
        %834 = vmatpush.bf16.msra.mxu0 %v823
        %835 = vmatpush.bf16.msra.mxu0 %v822
        %836 = vmatpush.bf16.msra.mxu0 %v821
        %837 = vmatpush.bf16.msra.mxu0 %v820
        %838 = vmatpush.bf16.msra.mxu0 %v819
        %839 = vmatpush.bf16.msra.mxu0 %v818
        %840 = vmatpush.bf16.msra.mxu0 %v817
        %841 = vmatmul.bf16.gmra.mxu0 %v764
        %v842 = vpop.f32.mrf.mxu0
        %v843 = vadd.f32 %v783, %v842
        %v844 = vpop.f32.mrf.mxu0
        %v845 = vadd.f32 %v783, %v844
        %846 = vdwg.mxu0
        %vm847 = vcmask 64512
        %848 = vst.msk [vmem:[%s428] sm:$0xff] %vm847, %v843
        %849 = vst.msk [vmem:[%s428 + $0x8] sm:$0xff] %vm847, %v845
        %s850 = smul.u32 2, %s24
        %p851 = scmp.lt.s32.totalorder %s850, 3
        %s852 = scalar_select %p851, %s850, 3
        %s853 = smul.addr %s852, 8
        %s854 = scalar_lea.vmem %s10, %s853
        // Predicated region
        $region77: #{tpu_custom_call.1} parent=59 // pred_check
          %p855 = pneg %p257
        $region78: #{tpu_custom_call.1} parent=59 // pred_check_branch
          %857 = sbr.rel (%p855) target = $region80
        $region79: #{tpu_custom_call.1} parent=59 // pred_region
          %s858 = smul.u32 2, %s24
        $region80: #{tpu_custom_call.1} parent=59 // pred_fallthru
          _
      $region60: #{tpu_custom_call.1} parent=5 // pred_fallthru
        _
      %p859 = scmp.le.s32.totalorder 2, %s19
      // Predicated region
      $region81: #{tpu_custom_call.1} parent=5 // pred_check
        %p860 = pneg %p859
      $region82: #{tpu_custom_call.1} parent=5 // pred_check_branch
        %862 = sbr.rel (%p860) target = $region84
      $region83: #{tpu_custom_call.1} parent=5 // pred_region
        %s863 = ssub.s32 %s19, 2
        // Predicated region
        $region85: #{tpu_custom_call.1} parent=83 // pred_check
          %p864 = pneg %p263
        $region86: #{tpu_custom_call.1} parent=83 // pred_check_branch
          %866 = sbr.rel (%p864) target = $region88
        $region87: #{tpu_custom_call.1} parent=83 // pred_region
          %s867 = smul.u32 2, %s25
          %p868 = scmp.lt.s32.totalorder %s867, 3
          %s869 = scalar_select %p868, %s867, 3
          %s870 = smul.addr %s869, 8
          %s871 = scalar_lea.vmem %s10, %s870
        $region88: #{tpu_custom_call.1} parent=83 // pred_fallthru
          _
      $region84: #{tpu_custom_call.1} parent=5 // pred_fallthru
        _
    $region6: #{tpu_custom_call.1} parent=1 // loop_footer
      %s23 = sadd.s32 1, %s19
    $region7: #{tpu_custom_call.1} parent=1 // loop_footer_branch
      %18 = sbr.rel target = $region3
    $region8: #{tpu_custom_call.1} parent=1 // loop_exit
      _
    %872 = vsyncpa [#allocation3], 1
    %s873 = scalar_lea.sflag [#allocation3], 1
    %874 = vsyncpa %s873, 1
    %875 = vsyncpa [#allocation5], 1
    %876 = vsyncpa [#allocation8], 1

</llo_original>
